<compile_context>
chip_gen: v5e
topology: v5e:2x2
jax: 0.10.0
libtpu: 0.0.40
codegen_flags: <defaults>
</compile_context>

<pallas_src>
import functools
import math

import jax
import jax.numpy as jnp
from jax.experimental import pallas as pl
from jax.experimental.pallas import tpu as pltpu

FEAT = 1664   # densenet169 feature width (hard-coded by the module)
HID = 1024    # graph hidden width (hard-coded by GraphFeatureFusion)


def _full_spec(shape):
    # Full-array block (allowed regardless of (8,128) divisibility).
    return pl.BlockSpec(shape, lambda *_: (0,) * len(shape))


def _smem_spec():
    # Whole (tiny) array placed in SMEM; read element-wise as scalars.
    return pl.BlockSpec(memory_space=pltpu.MemorySpace.SMEM)


# --------------------------- Pallas kernels ---------------------------------

def _image_path_kernel(x_ref, ccw_ref, ccb_ref, bbw_ref, bbb_ref, o_ref, *, inv_hw):
    # Fused: per-channel 1x1 conv + folded BN + ReLU  ->  spatial mean  ->
    # Linear(3 -> FEAT) (as 3 VPU broadcast-FMAs) -> ReLU.
    # TODO(synk): pretrained DenseNet-169 backbone is not replicated; this stand-in
    # preserves the downstream (N_img, 1664) shape / relu / adaptive-avg-pool
    # semantics only.
    x = x_ref[...]                                              # (N_img, HW) f32
    acc = jnp.zeros(o_ref.shape, jnp.float32)                   # (N_img, FEAT)
    for c in range(3):
        y_c = jnp.maximum(x * ccw_ref[c] + ccb_ref[c], 0.0)     # f32 VPU (v5e safe)
        feat_c = jnp.sum(y_c, axis=1, keepdims=True) * inv_hw   # (N_img, 1)
        acc = acc + feat_c * bbw_ref[pl.ds(c, 1), :]            # (N_img, FEAT) FMA
    o_ref[...] = jnp.maximum(acc + bbb_ref[...], 0.0)


def image_path(x2d, cc_w, cc_b, bb_w, bb_b):
    n_img, hw = x2d.shape
    f = bb_w.shape[1]
    return pl.pallas_call(
        functools.partial(_image_path_kernel, inv_hw=1.0 / hw),
        out_shape=jax.ShapeDtypeStruct((n_img, f), jnp.float32),
        grid=(1,),
        in_specs=[_full_spec((n_img, hw)),
                  _smem_spec(), _smem_spec(),
                  _full_spec((3, f)), _full_spec((1, f))],
        out_specs=_full_spec((n_img, f)),
    )(x2d, cc_w, cc_b, bb_w, bb_b.reshape(1, f))


def _gcn_kernel(adj_ref, x_ref, w_ref, b_ref, o_ref):
    # GCNConv (dense normalized adjacency) + the module's F.relu, for one column
    # tile of the weight/output.  bf16 MXU operands, f32 accumulation.
    xw = jnp.dot(x_ref[...].astype(jnp.bfloat16), w_ref[...],
                 preferred_element_type=jnp.float32)            # (N, tn)
    y = jnp.dot(adj_ref[...], xw, preferred_element_type=jnp.float32) + b_ref[...]
    o_ref[...] = jnp.maximum(y, 0.0)


def gcn_conv_relu(adj_norm, x, w_bf16, b, *, tn=512):
    n, k = x.shape
    f = w_bf16.shape[1]
    assert f % tn == 0
    return pl.pallas_call(
        _gcn_kernel,
        out_shape=jax.ShapeDtypeStruct((n, f), jnp.float32),
        grid=(f // tn,),
        in_specs=[pl.BlockSpec((n, n), lambda j: (0, 0)),
                  pl.BlockSpec((n, k), lambda j: (0, 0)),
                  pl.BlockSpec((k, tn), lambda j: (0, j)),   # weight tile: pipelined DMA
                  pl.BlockSpec((1, tn), lambda j: (0, j))],
        out_specs=pl.BlockSpec((n, tn), lambda j: (0, j)),
        compiler_params=pltpu.CompilerParams(
            dimension_semantics=("parallel",)),
    )(adj_norm, x, w_bf16, b.reshape(1, f))


def _aux_head_kernel(x_ref, w_ref, b_ref, o_ref):
    # MaxFusion (per-case max over its images) + aux Linear(1664 -> 3).
    m = jnp.max(x_ref[...], axis=1)                             # (B, FEAT)
    o_ref[...] = jnp.dot(m, w_ref[...],
                         preferred_element_type=jnp.float32) + b_ref[...]


def aux_head(feats3d, w, b):
    batch = feats3d.shape[0]
    c = w.shape[1]
    return pl.pallas_call(
        _aux_head_kernel,
        out_shape=jax.ShapeDtypeStruct((batch, c), jnp.float32),
        grid=(1,),
        in_specs=[_full_spec(feats3d.shape), _full_spec(w.shape), _full_spec((1, c))],
        out_specs=_full_spec((batch, c)),
    )(feats3d, w, b.reshape(1, c))


def _graph_head_kernel(x1_ref, x2_ref, x3_ref, w_ref, b_ref, o_ref):
    # sum_i cat([gmp(x_i), gap(x_i)], dim=1)  ->  head Linear(2048 -> 3).
    batch, _, hid = x1_ref.shape
    mx = jnp.zeros((batch, hid), jnp.float32)
    av = jnp.zeros((batch, hid), jnp.float32)
    for ref in (x1_ref, x2_ref, x3_ref):
        xr = ref[...]                                           # (B, n_i, HID)
        mx = mx + jnp.max(xr, axis=1)
        av = av + jnp.mean(xr, axis=1)
    g = jnp.concatenate([mx, av], axis=1)                       # (B, 2*HID)
    o_ref[...] = jnp.dot(g, w_ref[...],
                         preferred_element_type=jnp.float32) + b_ref[...]


def graph_head(pooled3d, w, b):
    batch = pooled3d[0].shape[0]
    c = w.shape[1]
    return pl.pallas_call(
        _graph_head_kernel,
        out_shape=jax.ShapeDtypeStruct((batch, c), jnp.float32),
        grid=(1,),
        in_specs=[_full_spec(pooled3d[0].shape),
                  _full_spec(pooled3d[1].shape),
                  _full_spec(pooled3d[2].shape),
                  _full_spec(w.shape), _full_spec((1, c))],
        out_specs=_full_spec((batch, c)),
    )(pooled3d[0], pooled3d[1], pooled3d[2], w, b.reshape(1, c))


# ------------------------------ JAX glue -------------------------------------

def gcn_norm(A):
    # D^{-1/2} (A + I) D^{-1/2}
    n = A.shape[0]
    a_hat = A + jnp.eye(n, dtype=A.dtype)
    dinv = jax.lax.rsqrt(a_hat.sum(axis=1))
    return a_hat * dinv[:, None] * dinv[None, :]


def topk_pool(x, A, p, batch_size, n_per, ratio=0.8):
    # TopKPooling: score = x@p/||p||, keep ceil(ratio*n) top nodes per graph,
    # kept x scaled by tanh(score); edges kept if both endpoints survive.
    # Static shapes (uniform graph size in this synthetic batch).
    k = int(math.ceil(ratio * n_per))
    score = (x @ p) / jnp.linalg.norm(p)                      # (N,)
    _, topi = jax.lax.top_k(score.reshape(batch_size, n_per), k)
    idx = (topi + jnp.arange(batch_size)[:, None] * n_per).reshape(-1)
    x_new = x[idx] * jnp.tanh(score[idx])[:, None]
    A_new = A[idx][:, idx]
    return x_new, A_new, k


def network_forward(x_list, edge_list, params):
    batch_size = len(x_list)
    img_len = [int(xi.shape[0]) for xi in x_list]
    n_per = img_len[0]                       # uniform in this synthetic setup
    x = jnp.concatenate(x_list, axis=0)      # (N_img, 1, H, W)  NCHW
    n_img, _, h, w = x.shape

    # Fused channel_conv + backbone stand-in (lane-dense (N_img, H*W) layout).
    feats = image_path(x.reshape(n_img, h * w),
                       params["cc_w"], params["cc_b"],
                       params["bb_w"], params["bb_b"])          # (N_img, FEAT) f32

    # aux branch: MaxFusion + Linear(1664 -> 3), fused in one kernel.
    feat_dim = feats.shape[1]
    aux_out = aux_head(feats.reshape(batch_size, n_per, feat_dim),
                       params["aux_w"], params["aux_b"])

    # graph branch: PyG-style batching -> dense block-diagonal adjacency (host glue).
    n_nodes = batch_size * n_per
    A = jnp.zeros((n_nodes, n_nodes), jnp.float32)
    for g, ei in enumerate(edge_list):
        src = jnp.asarray(ei[0], jnp.int32) + g * n_per
        dst = jnp.asarray(ei[1], jnp.int32) + g * n_per
        A = A.at[dst, src].set(1.0)

    node_x = feats
    n_cur = n_per
    pooled3d = []
    for wk, bk, pk in (("g1_w", "g1_b", "p1"),
                       ("g2_w", "g2_b", "p2"),
                       ("g3_w", "g3_b", "p3")):
        node_x = gcn_conv_relu(gcn_norm(A), node_x, params[wk], params[bk])
        node_x, A, n_cur = topk_pool(node_x, A, params[pk], batch_size, n_cur)
        pooled3d.append(node_x.reshape(batch_size, n_cur, node_x.shape[1]))

    # (gmp|gap) of each pooled graph, summed, + head Linear(2048 -> 3), one kernel.
    out = graph_head(pooled3d, params["head_w"], params["head_b"])    # (B, 3)
    return out, aux_out


# ------------------------------- main -----------------------------------------

if __name__ == "__main__":
    B, n_per, H, W = 2, 5, 32, 32

    key = jax.random.PRNGKey(0)
    ks = jax.random.split(key, 16)

    # channel_conv params: Conv2d(1,3,1) weight folded with BN (eps=1e-3,
    # gamma=1, beta=0, running_mean=0, running_var=1).
    conv_w = jax.random.normal(ks[0], (3,), jnp.float32) * 0.5
    bn_scale = 1.0 / jnp.sqrt(1.0 + 1e-3)
    params = {
        "cc_w": conv_w * bn_scale,                                   # (3,)  SMEM scalars
        "cc_b": jnp.zeros((3,), jnp.float32),
        "bb_w": jax.random.normal(ks[1], (3, FEAT), jnp.float32) * 0.1,
        "bb_b": jnp.zeros((FEAT,), jnp.float32),
        # Large GCN weights stored in bf16 (f32 accumulation on the MXU).
        "g1_w": (jax.random.normal(ks[2], (FEAT, HID), jnp.float32) * 0.02
                 ).astype(jnp.bfloat16),
        "g1_b": jnp.zeros((HID,), jnp.float32),
        "p1":   jax.random.normal(ks[3], (HID,), jnp.float32),
        "g2_w": (jax.random.normal(ks[4], (HID, HID), jnp.float32) * 0.02
                 ).astype(jnp.bfloat16),
        "g2_b": jnp.zeros((HID,), jnp.float32),
        "p2":   jax.random.normal(ks[5], (HID,), jnp.float32),
        "g3_w": (jax.random.normal(ks[6], (HID, HID), jnp.float32) * 0.02
                 ).astype(jnp.bfloat16),
        "g3_b": jnp.zeros((HID,), jnp.float32),
        "p3":   jax.random.normal(ks[7], (HID,), jnp.float32),
        "head_w": jax.random.normal(ks[8], (2 * HID, 3), jnp.float32) * 0.02,
        "head_b": jnp.zeros((3,), jnp.float32),
        "aux_w": jax.random.normal(ks[9], (FEAT, 3), jnp.float32) * 0.02,
        "aux_b": jnp.zeros((3,), jnp.float32),
    }

    # Inputs: list of per-case image stacks (n_per, 1, H, W) and per-case
    # edge_index (2, E) — here a bidirectional ring over the n_per slices.
    x_list = [jax.random.normal(ks[10 + b], (n_per, 1, H, W), jnp.float32)
              for b in range(B)]
    ring_src = list(range(n_per)) + [(i + 1) % n_per for i in range(n_per)]
    ring_dst = [(i + 1) % n_per for i in range(n_per)] + list(range(n_per))
    edge_list = [(ring_src, ring_dst) for _ in range(B)]

    out, aux_out = network_forward(x_list, edge_list, params)
    jax.block_until_ready((out, aux_out))
    assert out.shape == (B, 3) and aux_out.shape == (B, 3)
    print("KERNEL_OK")
</pallas_src>

<mosaic_0001>
module attributes {stable_mosaic.version = 11 : i64} {
  func.func @_image_path_kernel(%arg0: i32, %arg1: memref<10x1024xf32, #tpu.memory_space<vmem>>, %arg2: memref<3xf32, #tpu.memory_space<smem>>, %arg3: memref<3xf32, #tpu.memory_space<smem>>, %arg4: memref<3x1664xf32, #tpu.memory_space<vmem>>, %arg5: memref<1x1664xf32, #tpu.memory_space<vmem>>, %arg6: memref<10x1664xf32, #tpu.memory_space<vmem>>) attributes {dimension_semantics = [#tpu.dimension_semantics<arbitrary>], iteration_bounds = array<i64: 1>, scalar_prefetch = 0 : i64, scratch_operands = 0 : i64, tpu.core_type = #tpu.core_type<tc>, window_params = [{pipeline_mode = #tpu.pipeline_mode<synchronous>, transform_indices = @transform_0, window_bounds = array<i64: 10, 1024>}, {transform_indices = @transform_1, window_bounds = array<i64: 3>}, {transform_indices = @transform_2, window_bounds = array<i64: 3>}, {pipeline_mode = #tpu.pipeline_mode<synchronous>, transform_indices = @transform_3, window_bounds = array<i64: 3, 1664>}, {pipeline_mode = #tpu.pipeline_mode<synchronous>, transform_indices = @transform_4, window_bounds = array<i64: 1, 1664>}, {pipeline_mode = #tpu.pipeline_mode<synchronous>, transform_indices = @transform_5, window_bounds = array<i64: 10, 1664>}]} {
    %c0 = arith.constant 0 : index
    %c0_0 = arith.constant 0 : index
    %0 = vector.load %arg1[%c0, %c0_0] : memref<10x1024xf32, #tpu.memory_space<vmem>>, vector<10x1024xf32>
    %cst = arith.constant 0.000000e+00 : f32
    %1 = vector.broadcast %cst : f32 to vector<10x1664xf32>
    %c0_1 = arith.constant 0 : index
    %2 = memref.load %arg2[%c0_1] : memref<3xf32, #tpu.memory_space<smem>>
    %3 = vector.broadcast %2 : f32 to vector<10x1024xf32>
    %4 = arith.mulf %0, %3 : vector<10x1024xf32>
    %c0_2 = arith.constant 0 : index
    %5 = memref.load %arg3[%c0_2] : memref<3xf32, #tpu.memory_space<smem>>
    %6 = vector.broadcast %5 : f32 to vector<10x1024xf32>
    %7 = arith.addf %4, %6 : vector<10x1024xf32>
    %cst_3 = arith.constant 0.000000e+00 : f32
    %8 = vector.broadcast %cst_3 : f32 to vector<10x1024xf32>
    %9 = arith.maximumf %7, %8 : vector<10x1024xf32>
    %cst_4 = arith.constant dense<0.000000e+00> : vector<10xf32>
    %10 = vector.multi_reduction <add>, %9, %cst_4 [1] : vector<10x1024xf32> to vector<10xf32>
    %11 = vector.shape_cast %10 : vector<10xf32> to vector<10x1xf32>
    %cst_5 = arith.constant 9.765625E-4 : f32
    %12 = vector.broadcast %cst_5 : f32 to vector<10x1xf32>
    %13 = arith.mulf %11, %12 : vector<10x1xf32>
    %c0_6 = arith.constant 0 : index
    %c0_7 = arith.constant 0 : index
    %14 = vector.load %arg4[%c0_6, %c0_7] : memref<3x1664xf32, #tpu.memory_space<vmem>>, vector<1x1664xf32>
    %15 = vector.broadcast %13 : vector<10x1xf32> to vector<10x1664xf32>
    %16 = vector.broadcast %14 : vector<1x1664xf32> to vector<10x1664xf32>
    %17 = arith.mulf %15, %16 : vector<10x1664xf32>
    %18 = arith.addf %1, %17 : vector<10x1664xf32>
    %c1 = arith.constant 1 : index
    %19 = memref.load %arg2[%c1] : memref<3xf32, #tpu.memory_space<smem>>
    %20 = vector.broadcast %19 : f32 to vector<10x1024xf32>
    %21 = arith.mulf %0, %20 : vector<10x1024xf32>
    %c1_8 = arith.constant 1 : index
    %22 = memref.load %arg3[%c1_8] : memref<3xf32, #tpu.memory_space<smem>>
    %23 = vector.broadcast %22 : f32 to vector<10x1024xf32>
    %24 = arith.addf %21, %23 : vector<10x1024xf32>
    %cst_9 = arith.constant 0.000000e+00 : f32
    %25 = vector.broadcast %cst_9 : f32 to vector<10x1024xf32>
    %26 = arith.maximumf %24, %25 : vector<10x1024xf32>
    %cst_10 = arith.constant dense<0.000000e+00> : vector<10xf32>
    %27 = vector.multi_reduction <add>, %26, %cst_10 [1] : vector<10x1024xf32> to vector<10xf32>
    %28 = vector.shape_cast %27 : vector<10xf32> to vector<10x1xf32>
    %cst_11 = arith.constant 9.765625E-4 : f32
    %29 = vector.broadcast %cst_11 : f32 to vector<10x1xf32>
    %30 = arith.mulf %28, %29 : vector<10x1xf32>
    %c1_12 = arith.constant 1 : index
    %c0_13 = arith.constant 0 : index
    %31 = vector.load %arg4[%c1_12, %c0_13] : memref<3x1664xf32, #tpu.memory_space<vmem>>, vector<1x1664xf32>
    %32 = vector.broadcast %30 : vector<10x1xf32> to vector<10x1664xf32>
    %33 = vector.broadcast %31 : vector<1x1664xf32> to vector<10x1664xf32>
    %34 = arith.mulf %32, %33 : vector<10x1664xf32>
    %35 = arith.addf %18, %34 : vector<10x1664xf32>
    %c2 = arith.constant 2 : index
    %36 = memref.load %arg2[%c2] : memref<3xf32, #tpu.memory_space<smem>>
    %37 = vector.broadcast %36 : f32 to vector<10x1024xf32>
    %38 = arith.mulf %0, %37 : vector<10x1024xf32>
    %c2_14 = arith.constant 2 : index
    %39 = memref.load %arg3[%c2_14] : memref<3xf32, #tpu.memory_space<smem>>
    %40 = vector.broadcast %39 : f32 to vector<10x1024xf32>
    %41 = arith.addf %38, %40 : vector<10x1024xf32>
    %cst_15 = arith.constant 0.000000e+00 : f32
    %42 = vector.broadcast %cst_15 : f32 to vector<10x1024xf32>
    %43 = arith.maximumf %41, %42 : vector<10x1024xf32>
    %cst_16 = arith.constant dense<0.000000e+00> : vector<10xf32>
    %44 = vector.multi_reduction <add>, %43, %cst_16 [1] : vector<10x1024xf32> to vector<10xf32>
    %45 = vector.shape_cast %44 : vector<10xf32> to vector<10x1xf32>
    %cst_17 = arith.constant 9.765625E-4 : f32
    %46 = vector.broadcast %cst_17 : f32 to vector<10x1xf32>
    %47 = arith.mulf %45, %46 : vector<10x1xf32>
    %c2_18 = arith.constant 2 : index
    %c0_19 = arith.constant 0 : index
    %48 = vector.load %arg4[%c2_18, %c0_19] : memref<3x1664xf32, #tpu.memory_space<vmem>>, vector<1x1664xf32>
    %49 = vector.broadcast %47 : vector<10x1xf32> to vector<10x1664xf32>
    %50 = vector.broadcast %48 : vector<1x1664xf32> to vector<10x1664xf32>
    %51 = arith.mulf %49, %50 : vector<10x1664xf32>
    %52 = arith.addf %35, %51 : vector<10x1664xf32>
    %c0_20 = arith.constant 0 : index
    %c0_21 = arith.constant 0 : index
    %53 = vector.load %arg5[%c0_20, %c0_21] : memref<1x1664xf32, #tpu.memory_space<vmem>>, vector<1x1664xf32>
    %54 = vector.broadcast %53 : vector<1x1664xf32> to vector<10x1664xf32>
    %55 = arith.addf %52, %54 : vector<10x1664xf32>
    %cst_22 = arith.constant 0.000000e+00 : f32
    %56 = vector.broadcast %cst_22 : f32 to vector<10x1664xf32>
    %57 = arith.maximumf %55, %56 : vector<10x1664xf32>
    %c0_23 = arith.constant 0 : index
    %c0_24 = arith.constant 0 : index
    %58 = vector.load %arg6[%c0_23, %c0_24] : memref<10x1664xf32, #tpu.memory_space<vmem>>, vector<10x1664xf32>
    tpu.vector_store %arg6[%c0_23, %c0_24], %57 {strides = array<i32>} : memref<10x1664xf32, #tpu.memory_space<vmem>>, vector<10x1664xf32>,
    return
  }
  func.func @transform_0(%arg0: i32) -> (i32, i32) {
    %c0_i32 = arith.constant 0 : i32
    %c0_i32_0 = arith.constant 0 : i32
    %c0_i32_1 = arith.constant 0 : i32
    return %c0_i32, %c0_i32_0 : i32, i32
  }
  func.func @transform_1(%arg0: i32) -> i32 {
    %c0_i32 = arith.constant 0 : i32
    %c0_i32_0 = arith.constant 0 : i32
    return %c0_i32 : i32
  }
  func.func @transform_2(%arg0: i32) -> i32 {
    %c0_i32 = arith.constant 0 : i32
    %c0_i32_0 = arith.constant 0 : i32
    return %c0_i32 : i32
  }
  func.func @transform_3(%arg0: i32) -> (i32, i32) {
    %c0_i32 = arith.constant 0 : i32
    %c0_i32_0 = arith.constant 0 : i32
    %c0_i32_1 = arith.constant 0 : i32
    return %c0_i32, %c0_i32_0 : i32, i32
  }
  func.func @transform_4(%arg0: i32) -> (i32, i32) {
    %c0_i32 = arith.constant 0 : i32
    %c0_i32_0 = arith.constant 0 : i32
    %c0_i32_1 = arith.constant 0 : i32
    return %c0_i32, %c0_i32_0 : i32, i32
  }
  func.func @transform_5(%arg0: i32) -> (i32, i32) {
    %c0_i32 = arith.constant 0 : i32
    %c0_i32_0 = arith.constant 0 : i32
    %c0_i32_1 = arith.constant 0 : i32
    return %c0_i32, %c0_i32_0 : i32, i32
  }
}

</mosaic_0001>

<llo_original>
// kernel: tpu_custom_call.1
$region0: #{tpu_custom_call.1}
  #allocation0 [shape = 'u32[]', space=smem, size = 0x4, offset = 0x4, fixed_abs, tag = 'smem constant byte address 0x4 - core index']
  #allocation1 [shape = 'u32[72,128]{1,0:T(1,128)}', space=vmem, size = 0x9000, scoped, tag = 'internal scratch']
  %s0 = inlined_call_operand.hbm [shape: f32[10,1024], index: 0, kind: input, shape index: {}]
  %s1 = inlined_call_operand.hbm [shape: f32[3], index: 1, kind: input, shape index: {}]
  %s2 = inlined_call_operand.vmem [shape: f32[3], index: 2, kind: input, shape index: {}]
  %s3 = inlined_call_operand.hbm [shape: f32[3,1664], index: 3, kind: input, shape index: {}]
  %s4 = inlined_call_operand.hbm [shape: f32[1,1664], index: 4, kind: input, shape index: {}]
  %s5 = inlined_call_operand.hbm [shape: f32[10,1664], index: 5, kind: output, shape index: {}]
  %s6 = sld [smem:[#allocation0]]
  $region50: #{tpu_custom_call.1} parent=0
    _
  %s8 = ssub.s32 1, %s6
  %s9 = scalar_select 0, %s8, %s6
  $region1: #{tpu_custom_call.1} parent=0
    #allocation2 [shape = 'u8[65536]{0}', space=vmem, size = 0x10000, scoped, tag = 'input window, operand 0, single buffered']
    #allocation3 [shape = 's32[1]{0}', space=sflag, size = 0x4, scoped, tag = 'scoped memory for tpu_custom_call.1']
    #allocation4 [shape = 's32[1]{0}', space=sflag, size = 0x4, scoped, tag = 'scoped memory for tpu_custom_call.1']
    #allocation5 [shape = 's32[1]{0}', space=sflag, size = 0x4, scoped, tag = 'scoped memory for tpu_custom_call.1']
    #allocation6 [shape = 's32[1]{0}', space=sflag, size = 0x4, scoped, tag = 'scoped memory for tpu_custom_call.1']
    #allocation7 [shape = 'u8[512]{0}', space=smem, size = 0x200, scoped, tag = 'input window, operand 1, single buffered']
    #allocation8 [shape = 'u8[512]{0}', space=smem, size = 0x200, scoped, tag = 'input window, operand 2, single buffered']
    #allocation9 [shape = 'u8[26624]{0}', space=vmem, size = 0x6800, scoped, tag = 'input window, operand 3, single buffered']
    #allocation10 [shape = 's32[1]{0}', space=sflag, size = 0x4, scoped, tag = 'scoped memory for tpu_custom_call.1']
    #allocation11 [shape = 'u8[6656]{0}', space=vmem, size = 0x1c00, scoped, tag = 'input window, operand 4, single buffered']
    #allocation12 [shape = 'u8[106496]{0}', space=vmem, size = 0x1a000, scoped, tag = 'output window, operand 0, single buffered']
    %10 = vsyncpa [#allocation3], 0
    %11 = vsyncpa [#allocation5], 0
    %12 = vsyncpa [#allocation6], 0
    %13 = vsyncpa [#allocation10], 0
    %14 = vsyncpa [#allocation4], 0
    // Predicated region
    $region2: #{tpu_custom_call.1} parent=1 // pred_check
      _
    $region3: #{tpu_custom_call.1} parent=1 // pred_check_branch
      %16 = sbr.rel (0) target = $region5
    $region4: #{tpu_custom_call.1} parent=1 // pred_region
      %18 = vsyncadd [#allocation3], 0
      %s19 = sshll.u32 %s0, 4
      %s20 = int_to_ptr.hbm [resolvable:$true] %s19
      %s21 = sshll.u32 [#allocation2], 4
      %s22 = int_to_ptr.vmem [resolvable:$true] %s21
      %27 = dma.hbm_to_vmem [thread:$0]  %s20, 2048, %s22, [#allocation3], 1024, 1024, 64
    $region5: #{tpu_custom_call.1} parent=1 // pred_fallthru
      _
    // Predicated region
    $region6: #{tpu_custom_call.1} parent=1 // pred_check
      _
    $region7: #{tpu_custom_call.1} parent=1 // pred_check_branch
      %29 = sbr.rel (0) target = $region9
    $region8: #{tpu_custom_call.1} parent=1 // pred_region
      %31 = vsyncadd [#allocation5], 0
      %s33 = sshll.u32 %s1, 4
      %s34 = int_to_ptr.hbm [resolvable:$true] %s33
      %36 = dma.hbm_to_smem %s34, 16, [#allocation7], [#allocation5]
    $region9: #{tpu_custom_call.1} parent=1 // pred_fallthru
      _
    // Predicated region
    $region10: #{tpu_custom_call.1} parent=1 // pred_check
      _
    $region11: #{tpu_custom_call.1} parent=1 // pred_check_branch
      %38 = sbr.rel (0) target = $region13
    $region12: #{tpu_custom_call.1} parent=1 // pred_region
      %40 = vsyncadd [#allocation6], 0
      %s42 = sshll.u32 %s2, 4
      %s43 = int_to_ptr.vmem [resolvable:$true] %s42
      %45 = dma.vmem_to_smem %s43, 16, [#allocation8], [#allocation6]
    $region13: #{tpu_custom_call.1} parent=1 // pred_fallthru
      _
    // Predicated region
    $region14: #{tpu_custom_call.1} parent=1 // pred_check
      _
    $region15: #{tpu_custom_call.1} parent=1 // pred_check_branch
      %47 = sbr.rel (0) target = $region17
    $region16: #{tpu_custom_call.1} parent=1 // pred_region
      %49 = vsyncadd [#allocation10], 0
      %s51 = sshll.u32 %s3, 4
      %s52 = int_to_ptr.hbm [resolvable:$true] %s51
      %s53 = sshll.u32 [#allocation9], 4
      %s54 = int_to_ptr.vmem [resolvable:$true] %s53
      %56 = dma.hbm_to_vmem [thread:$0]  %s52, 832, %s54, [#allocation10]
    $region17: #{tpu_custom_call.1} parent=1 // pred_fallthru
      _
    // Predicated region
    $region18: #{tpu_custom_call.1} parent=1 // pred_check
      _
    $region19: #{tpu_custom_call.1} parent=1 // pred_check_branch
      %58 = sbr.rel (0) target = $region21
    $region20: #{tpu_custom_call.1} parent=1 // pred_region
      %60 = vsyncadd [#allocation10], 0
      %s62 = sshll.u32 %s4, 4
      %s63 = int_to_ptr.hbm [resolvable:$true] %s62
      %s64 = sshll.u32 [#allocation11], 4
      %s65 = int_to_ptr.vmem [resolvable:$true] %s64
      %67 = dma.hbm_to_vmem [thread:$0]  %s63, 208, %s65, [#allocation10]
    $region21: #{tpu_custom_call.1} parent=1 // pred_fallthru
      _
    // Predicated region
    $region22: #{tpu_custom_call.1} parent=1 // pred_check
      _
    $region23: #{tpu_custom_call.1} parent=1 // pred_check_branch
      %69 = sbr.rel (0) target = $region25
    $region24: #{tpu_custom_call.1} parent=1 // pred_region
      %71 = dma.done [#allocation3], 2048
    $region25: #{tpu_custom_call.1} parent=1 // pred_fallthru
      _
    // Predicated region
    $region26: #{tpu_custom_call.1} parent=1 // pred_check
      _
    $region27: #{tpu_custom_call.1} parent=1 // pred_check_branch
      %73 = sbr.rel (0) target = $region29
    $region28: #{tpu_custom_call.1} parent=1 // pred_region
      %75 = dma.done [#allocation5], 16
    $region29: #{tpu_custom_call.1} parent=1 // pred_fallthru
      _
    // Predicated region
    $region30: #{tpu_custom_call.1} parent=1 // pred_check
      _
    $region31: #{tpu_custom_call.1} parent=1 // pred_check_branch
      %77 = sbr.rel (0) target = $region33
    $region32: #{tpu_custom_call.1} parent=1 // pred_region
      %79 = dma.done [#allocation6], 16
    $region33: #{tpu_custom_call.1} parent=1 // pred_fallthru
      _
    // Predicated region
    $region34: #{tpu_custom_call.1} parent=1 // pred_check
      _
    $region35: #{tpu_custom_call.1} parent=1 // pred_check_branch
      %81 = sbr.rel (0) target = $region37
    $region36: #{tpu_custom_call.1} parent=1 // pred_region
      %83 = dma.done [#allocation10], 832
    $region37: #{tpu_custom_call.1} parent=1 // pred_fallthru
      _
    // Predicated region
    $region38: #{tpu_custom_call.1} parent=1 // pred_check
      _
    $region39: #{tpu_custom_call.1} parent=1 // pred_check_branch
      %85 = sbr.rel (0) target = $region41
    $region40: #{tpu_custom_call.1} parent=1 // pred_region
      %87 = dma.done [#allocation10], 208
    $region41: #{tpu_custom_call.1} parent=1 // pred_fallthru
      _
    %88 = sfence
    %v89 = vld [vmem:[#allocation2] sm:$0xff]
    %v90 = vld [vmem:[#allocation2 + $0x8] sm:$0xff]
    %v91 = vld [vmem:[#allocation2 + $0x10] sm:$0xff]
    %v92 = vld [vmem:[#allocation2 + $0x18] sm:$0xff]
    %v93 = vld [vmem:[#allocation2 + $0x20] sm:$0xff]
    %v94 = vld [vmem:[#allocation2 + $0x28] sm:$0xff]
    %v95 = vld [vmem:[#allocation2 + $0x30] sm:$0xff]
    %v96 = vld [vmem:[#allocation2 + $0x38] sm:$0xff]
    %v97 = vld [vmem:[#allocation2 + $0x40] sm:$0x3]
    %v98 = vld [vmem:[#allocation2 + $0x48] sm:$0x3]
    %v99 = vld [vmem:[#allocation2 + $0x50] sm:$0x3]
    %v100 = vld [vmem:[#allocation2 + $0x58] sm:$0x3]
    %v101 = vld [vmem:[#allocation2 + $0x60] sm:$0x3]
    %v102 = vld [vmem:[#allocation2 + $0x68] sm:$0x3]
    %v103 = vld [vmem:[#allocation2 + $0x70] sm:$0x3]
    %v104 = vld [vmem:[#allocation2 + $0x78] sm:$0x3]
    %s105 = sld [smem:[#allocation7]]
    %v106 = vstv %s105
    %v107 = vmul.f32 %v89, %v106
    %v108 = vmul.f32 %v90, %v106
    %v109 = vmul.f32 %v91, %v106
    %v110 = vmul.f32 %v92, %v106
    %v111 = vmul.f32 %v93, %v106
    %v112 = vmul.f32 %v94, %v106
    %v113 = vmul.f32 %v95, %v106
    %v114 = vmul.f32 %v96, %v106
    %v115 = vmul.f32 %v97, %v106
    %v116 = vmul.f32 %v98, %v106
    %v117 = vmul.f32 %v99, %v106
    %v118 = vmul.f32 %v100, %v106
    %v119 = vmul.f32 %v101, %v106
    %v120 = vmul.f32 %v102, %v106
    %v121 = vmul.f32 %v103, %v106
    %v122 = vmul.f32 %v104, %v106
    %s123 = sld [smem:[#allocation8]]
    %v124 = vstv %s123
    %v125 = vadd.f32 %v107, %v124
    %v126 = vadd.f32 %v108, %v124
    %v127 = vadd.f32 %v109, %v124
    %v128 = vadd.f32 %v110, %v124
    %v129 = vadd.f32 %v111, %v124
    %v130 = vadd.f32 %v112, %v124
    %v131 = vadd.f32 %v113, %v124
    %v132 = vadd.f32 %v114, %v124
    %v133 = vadd.f32 %v115, %v124
    %v134 = vadd.f32 %v116, %v124
    %v135 = vadd.f32 %v117, %v124
    %v136 = vadd.f32 %v118, %v124
    %v137 = vadd.f32 %v119, %v124
    %v138 = vadd.f32 %v120, %v124
    %v139 = vadd.f32 %v121, %v124
    %v140 = vadd.f32 %v122, %v124
    %v141 = vmax.f32 %v125, 0.0
    %v142 = vmax.f32 %v126, 0.0
    %v143 = vmax.f32 %v127, 0.0
    %v144 = vmax.f32 %v128, 0.0
    %v145 = vmax.f32 %v129, 0.0
    %v146 = vmax.f32 %v130, 0.0
    %v147 = vmax.f32 %v131, 0.0
    %v148 = vmax.f32 %v132, 0.0
    %v149 = vmax.f32 %v133, 0.0
    %v150 = vmax.f32 %v134, 0.0
    %v151 = vmax.f32 %v135, 0.0
    %v152 = vmax.f32 %v136, 0.0
    %v153 = vmax.f32 %v137, 0.0
    %v154 = vmax.f32 %v138, 0.0
    %v155 = vmax.f32 %v139, 0.0
    %v156 = vmax.f32 %v140, 0.0
    %v157 = vadd.f32 %v141, %v142
    %v158 = vadd.f32 %v157, %v143
    %v159 = vadd.f32 %v158, %v144
    %v160 = vadd.f32 %v159, %v145
    %v161 = vadd.f32 %v160, %v146
    %v162 = vadd.f32 %v161, %v147
    %v163 = vadd.f32 %v162, %v148
    %164 = vadd.xlane.f32.xlu0 %v163
    %v165 = vpop.xlane.xlu0 %164
    %vm166 = vcmask 1041408
    %v167 = vsel %vm166, %v149, 0.0
    %v168 = vsel %vm166, %v150, 0.0
    %v169 = vadd.f32 %v167, %v168
    %v170 = vsel %vm166, %v151, 0.0
    %v171 = vadd.f32 %v169, %v170
    %v172 = vsel %vm166, %v152, 0.0
    %v173 = vadd.f32 %v171, %v172
    %v174 = vsel %vm166, %v153, 0.0
    %v175 = vadd.f32 %v173, %v174
    %v176 = vsel %vm166, %v154, 0.0
    %v177 = vadd.f32 %v175, %v176
    %v178 = vsel %vm166, %v155, 0.0
    %v179 = vadd.f32 %v177, %v178
    %v180 = vsel %vm166, %v156, 0.0
    %v181 = vadd.f32 %v179, %v180
    %182 = vadd.xlane.f32.xlu0 %v181
    %v183 = vpop.xlane.xlu0 %182
    %v184 = vmul.f32 %v165, 0.0009765625
    %v185 = vmul.f32 %v183, 0.0009765625
    %v186 = vld [vmem:[#allocation9] ss:$4 sm:$0xff]
    %s187 = scalar_lea.vmem [#allocation9], 32
    %v188 = vld [vmem:[%s187] ss:$4 sm:$0x1f]
    %v191 = vperm.slane %v186, 0
    %v192 = vperm.slane %v186, 1
    %v193 = vperm.slane %v186, 2
    %v194 = vperm.slane %v186, 3
    %v195 = vperm.slane %v186, 4
    %v196 = vperm.slane %v186, 5
    %v197 = vperm.slane %v186, 6
    %v198 = vperm.slane %v186, 7
    %v199 = vperm.slane %v188, 0
    %v200 = vperm.slane %v188, 1
    %v201 = vperm.slane %v188, 2
    %v202 = vperm.slane %v188, 3
    %v203 = vperm.slane %v188, 4
    %v217 = vmul.f32 %v184, %v191
    %v218 = vmul.f32 %v184, %v192
    %v219 = vmul.f32 %v184, %v193
    %v220 = vmul.f32 %v184, %v194
    %v221 = vmul.f32 %v184, %v195
    %v222 = vmul.f32 %v184, %v196
    %v223 = vmul.f32 %v184, %v197
    %v224 = vmul.f32 %v184, %v198
    %v225 = vmul.f32 %v184, %v199
    %v226 = vmul.f32 %v184, %v200
    %v227 = vmul.f32 %v184, %v201
    %v228 = vmul.f32 %v184, %v202
    %v229 = vmul.f32 %v184, %v203
    %v230 = vmul.f32 %v185, %v191
    %v231 = vmul.f32 %v185, %v192
    %v232 = vmul.f32 %v185, %v193
    %v233 = vmul.f32 %v185, %v194
    %v234 = vmul.f32 %v185, %v195
    %v235 = vmul.f32 %v185, %v196
    %v236 = vmul.f32 %v185, %v197
    %v237 = vmul.f32 %v185, %v198
    %v238 = vmul.f32 %v185, %v199
    %v239 = vmul.f32 %v185, %v200
    %v240 = vmul.f32 %v185, %v201
    %v241 = vmul.f32 %v185, %v202
    %v242 = vmul.f32 %v185, %v203
    %v243 = vadd.f32 %v217, 0.0
    %v244 = vadd.f32 %v218, 0.0
    %v245 = vadd.f32 %v219, 0.0
    %v246 = vadd.f32 %v220, 0.0
    %v247 = vadd.f32 %v221, 0.0
    %v248 = vadd.f32 %v222, 0.0
    %v249 = vadd.f32 %v223, 0.0
    %v250 = vadd.f32 %v224, 0.0
    %v251 = vadd.f32 %v225, 0.0
    %v252 = vadd.f32 %v226, 0.0
    %v253 = vadd.f32 %v227, 0.0
    %v254 = vadd.f32 %v228, 0.0
    %v255 = vadd.f32 %v229, 0.0
    %v256 = vadd.f32 %v230, 0.0
    %v257 = vadd.f32 %v231, 0.0
    %v258 = vadd.f32 %v232, 0.0
    %v259 = vadd.f32 %v233, 0.0
    %v260 = vadd.f32 %v234, 0.0
    %v261 = vadd.f32 %v235, 0.0
    %v262 = vadd.f32 %v236, 0.0
    %v263 = vadd.f32 %v237, 0.0
    %v264 = vadd.f32 %v238, 0.0
    %v265 = vadd.f32 %v239, 0.0
    %v266 = vadd.f32 %v240, 0.0
    %v267 = vadd.f32 %v241, 0.0
    %v268 = vadd.f32 %v242, 0.0
    %s269 = sld [smem:[#allocation7 + $0x1]]
    %v270 = vstv %s269
    %v271 = vmul.f32 %v89, %v270
    %v272 = vmul.f32 %v90, %v270
    %v273 = vmul.f32 %v91, %v270
    %v274 = vmul.f32 %v92, %v270
    %v275 = vmul.f32 %v93, %v270
    %v276 = vmul.f32 %v94, %v270
    %v277 = vmul.f32 %v95, %v270
    %v278 = vmul.f32 %v96, %v270
    %v279 = vmul.f32 %v97, %v270
    %v280 = vmul.f32 %v98, %v270
    %v281 = vmul.f32 %v99, %v270
    %v282 = vmul.f32 %v100, %v270
    %v283 = vmul.f32 %v101, %v270
    %v284 = vmul.f32 %v102, %v270
    %v285 = vmul.f32 %v103, %v270
    %v286 = vmul.f32 %v104, %v270
    %s287 = sld [smem:[#allocation8 + $0x1]]
    %v288 = vstv %s287
    %v289 = vadd.f32 %v271, %v288
    %v290 = vadd.f32 %v272, %v288
    %v291 = vadd.f32 %v273, %v288
    %v292 = vadd.f32 %v274, %v288
    %v293 = vadd.f32 %v275, %v288
    %v294 = vadd.f32 %v276, %v288
    %v295 = vadd.f32 %v277, %v288
    %v296 = vadd.f32 %v278, %v288
    %v297 = vadd.f32 %v279, %v288
    %v298 = vadd.f32 %v280, %v288
    %v299 = vadd.f32 %v281, %v288
    %v300 = vadd.f32 %v282, %v288
    %v301 = vadd.f32 %v283, %v288
    %v302 = vadd.f32 %v284, %v288
    %v303 = vadd.f32 %v285, %v288
    %v304 = vadd.f32 %v286, %v288
    %v305 = vmax.f32 %v289, 0.0
    %v306 = vmax.f32 %v290, 0.0
    %v307 = vmax.f32 %v291, 0.0
    %v308 = vmax.f32 %v292, 0.0
    %v309 = vmax.f32 %v293, 0.0
    %v310 = vmax.f32 %v294, 0.0
    %v311 = vmax.f32 %v295, 0.0
    %v312 = vmax.f32 %v296, 0.0
    %v313 = vmax.f32 %v297, 0.0
    %v314 = vmax.f32 %v298, 0.0
    %v315 = vmax.f32 %v299, 0.0
    %v316 = vmax.f32 %v300, 0.0
    %v317 = vmax.f32 %v301, 0.0
    %v318 = vmax.f32 %v302, 0.0
    %v319 = vmax.f32 %v303, 0.0
    %v320 = vmax.f32 %v304, 0.0
    %v321 = vadd.f32 %v305, %v306
    %v322 = vadd.f32 %v321, %v307
    %v323 = vadd.f32 %v322, %v308
    %v324 = vadd.f32 %v323, %v309
    %v325 = vadd.f32 %v324, %v310
    %v326 = vadd.f32 %v325, %v311
    %v327 = vadd.f32 %v326, %v312
    %328 = vadd.xlane.f32.xlu0 %v327
    %v329 = vpop.xlane.xlu0 %328
    %v330 = vsel %vm166, %v313, 0.0
    %v331 = vsel %vm166, %v314, 0.0
    %v332 = vadd.f32 %v330, %v331
    %v333 = vsel %vm166, %v315, 0.0
    %v334 = vadd.f32 %v332, %v333
    %v335 = vsel %vm166, %v316, 0.0
    %v336 = vadd.f32 %v334, %v335
    %v337 = vsel %vm166, %v317, 0.0
    %v338 = vadd.f32 %v336, %v337
    %v339 = vsel %vm166, %v318, 0.0
    %v340 = vadd.f32 %v338, %v339
    %v341 = vsel %vm166, %v319, 0.0
    %v342 = vadd.f32 %v340, %v341
    %v343 = vsel %vm166, %v320, 0.0
    %v344 = vadd.f32 %v342, %v343
    %345 = vadd.xlane.f32.xlu0 %v344
    %v346 = vpop.xlane.xlu0 %345
    %v347 = vmul.f32 %v329, 0.0009765625
    %v348 = vmul.f32 %v346, 0.0009765625
    %s349 = scalar_lea.vmem [#allocation9], 1
    %v350 = vld [vmem:[%s349] ss:$4 sm:$0xff]
    %s351 = scalar_lea.vmem [#allocation9], 33
    %v352 = vld [vmem:[%s351] ss:$4 sm:$0x1f]
    %v355 = vperm.slane %v350, 0
    %v356 = vperm.slane %v350, 1
    %v357 = vperm.slane %v350, 2
    %v358 = vperm.slane %v350, 3
    %v359 = vperm.slane %v350, 4
    %v360 = vperm.slane %v350, 5
    %v361 = vperm.slane %v350, 6
    %v362 = vperm.slane %v350, 7
    %v363 = vperm.slane %v352, 0
    %v364 = vperm.slane %v352, 1
    %v365 = vperm.slane %v352, 2
    %v366 = vperm.slane %v352, 3
    %v367 = vperm.slane %v352, 4
    %v381 = vmul.f32 %v347, %v355
    %v382 = vmul.f32 %v347, %v356
    %v383 = vmul.f32 %v347, %v357
    %v384 = vmul.f32 %v347, %v358
    %v385 = vmul.f32 %v347, %v359
    %v386 = vmul.f32 %v347, %v360
    %v387 = vmul.f32 %v347, %v361
    %v388 = vmul.f32 %v347, %v362
    %v389 = vmul.f32 %v347, %v363
    %v390 = vmul.f32 %v347, %v364
    %v391 = vmul.f32 %v347, %v365
    %v392 = vmul.f32 %v347, %v366
    %v393 = vmul.f32 %v347, %v367
    %v394 = vmul.f32 %v348, %v355
    %v395 = vmul.f32 %v348, %v356
    %v396 = vmul.f32 %v348, %v357
    %v397 = vmul.f32 %v348, %v358
    %v398 = vmul.f32 %v348, %v359
    %v399 = vmul.f32 %v348, %v360
    %v400 = vmul.f32 %v348, %v361
    %v401 = vmul.f32 %v348, %v362
    %v402 = vmul.f32 %v348, %v363
    %v403 = vmul.f32 %v348, %v364
    %v404 = vmul.f32 %v348, %v365
    %v405 = vmul.f32 %v348, %v366
    %v406 = vmul.f32 %v348, %v367
    %v407 = vadd.f32 %v243, %v381
    %v408 = vadd.f32 %v244, %v382
    %v409 = vadd.f32 %v245, %v383
    %v410 = vadd.f32 %v246, %v384
    %v411 = vadd.f32 %v247, %v385
    %v412 = vadd.f32 %v248, %v386
    %v413 = vadd.f32 %v249, %v387
    %v414 = vadd.f32 %v250, %v388
    %v415 = vadd.f32 %v251, %v389
    %v416 = vadd.f32 %v252, %v390
    %v417 = vadd.f32 %v253, %v391
    %v418 = vadd.f32 %v254, %v392
    %v419 = vadd.f32 %v255, %v393
    %v420 = vadd.f32 %v256, %v394
    %v421 = vadd.f32 %v257, %v395
    %v422 = vadd.f32 %v258, %v396
    %v423 = vadd.f32 %v259, %v397
    %v424 = vadd.f32 %v260, %v398
    %v425 = vadd.f32 %v261, %v399
    %v426 = vadd.f32 %v262, %v400
    %v427 = vadd.f32 %v263, %v401
    %v428 = vadd.f32 %v264, %v402
    %v429 = vadd.f32 %v265, %v403
    %v430 = vadd.f32 %v266, %v404
    %v431 = vadd.f32 %v267, %v405
    %v432 = vadd.f32 %v268, %v406
    %s433 = sld [smem:[#allocation7 + $0x2]]
    %v434 = vstv %s433
    %v435 = vmul.f32 %v89, %v434
    %v436 = vmul.f32 %v90, %v434
    %v437 = vmul.f32 %v91, %v434
    %v438 = vmul.f32 %v92, %v434
    %v439 = vmul.f32 %v93, %v434
    %v440 = vmul.f32 %v94, %v434
    %v441 = vmul.f32 %v95, %v434
    %v442 = vmul.f32 %v96, %v434
    %v443 = vmul.f32 %v97, %v434
    %v444 = vmul.f32 %v98, %v434
    %v445 = vmul.f32 %v99, %v434
    %v446 = vmul.f32 %v100, %v434
    %v447 = vmul.f32 %v101, %v434
    %v448 = vmul.f32 %v102, %v434
    %v449 = vmul.f32 %v103, %v434
    %v450 = vmul.f32 %v104, %v434
    %s451 = sld [smem:[#allocation8 + $0x2]]
    %v452 = vstv %s451
    %v453 = vadd.f32 %v435, %v452
    %v454 = vadd.f32 %v436, %v452
    %v455 = vadd.f32 %v437, %v452
    %v456 = vadd.f32 %v438, %v452
    %v457 = vadd.f32 %v439, %v452
    %v458 = vadd.f32 %v440, %v452
    %v459 = vadd.f32 %v441, %v452
    %v460 = vadd.f32 %v442, %v452
    %v461 = vadd.f32 %v443, %v452
    %v462 = vadd.f32 %v444, %v452
    %v463 = vadd.f32 %v445, %v452
    %v464 = vadd.f32 %v446, %v452
    %v465 = vadd.f32 %v447, %v452
    %v466 = vadd.f32 %v448, %v452
    %v467 = vadd.f32 %v449, %v452
    %v468 = vadd.f32 %v450, %v452
    %v469 = vmax.f32 %v453, 0.0
    %v470 = vmax.f32 %v454, 0.0
    %v471 = vmax.f32 %v455, 0.0
    %v472 = vmax.f32 %v456, 0.0
    %v473 = vmax.f32 %v457, 0.0
    %v474 = vmax.f32 %v458, 0.0
    %v475 = vmax.f32 %v459, 0.0
    %v476 = vmax.f32 %v460, 0.0
    %v477 = vmax.f32 %v461, 0.0
    %v478 = vmax.f32 %v462, 0.0
    %v479 = vmax.f32 %v463, 0.0
    %v480 = vmax.f32 %v464, 0.0
    %v481 = vmax.f32 %v465, 0.0
    %v482 = vmax.f32 %v466, 0.0
    %v483 = vmax.f32 %v467, 0.0
    %v484 = vmax.f32 %v468, 0.0
    %v485 = vadd.f32 %v469, %v470
    %v486 = vadd.f32 %v485, %v471
    %v487 = vadd.f32 %v486, %v472
    %v488 = vadd.f32 %v487, %v473
    %v489 = vadd.f32 %v488, %v474
    %v490 = vadd.f32 %v489, %v475
    %v491 = vadd.f32 %v490, %v476
    %492 = vadd.xlane.f32.xlu0 %v491
    %v493 = vpop.xlane.xlu0 %492
    %v494 = vsel %vm166, %v477, 0.0
    %v495 = vsel %vm166, %v478, 0.0
    %v496 = vadd.f32 %v494, %v495
    %v497 = vsel %vm166, %v479, 0.0
    %v498 = vadd.f32 %v496, %v497
    %v499 = vsel %vm166, %v480, 0.0
    %v500 = vadd.f32 %v498, %v499
    %v501 = vsel %vm166, %v481, 0.0
    %v502 = vadd.f32 %v500, %v501
    %v503 = vsel %vm166, %v482, 0.0
    %v504 = vadd.f32 %v502, %v503
    %v505 = vsel %vm166, %v483, 0.0
    %v506 = vadd.f32 %v504, %v505
    %v507 = vsel %vm166, %v484, 0.0
    %v508 = vadd.f32 %v506, %v507
    %509 = vadd.xlane.f32.xlu0 %v508
    %v510 = vpop.xlane.xlu0 %509
    %v511 = vmul.f32 %v493, 0.0009765625
    %v512 = vmul.f32 %v510, 0.0009765625
    %s513 = scalar_lea.vmem [#allocation9], 2
    %v514 = vld [vmem:[%s513] ss:$4 sm:$0xff]
    %s515 = scalar_lea.vmem [#allocation9], 34
    %v516 = vld [vmem:[%s515] ss:$4 sm:$0x1f]
    %v519 = vperm.slane %v514, 0
    %v520 = vperm.slane %v514, 1
    %v521 = vperm.slane %v514, 2
    %v522 = vperm.slane %v514, 3
    %v523 = vperm.slane %v514, 4
    %v524 = vperm.slane %v514, 5
    %v525 = vperm.slane %v514, 6
    %v526 = vperm.slane %v514, 7
    %v527 = vperm.slane %v516, 0
    %v528 = vperm.slane %v516, 1
    %v529 = vperm.slane %v516, 2
    %v530 = vperm.slane %v516, 3
    %v531 = vperm.slane %v516, 4
    %v545 = vmul.f32 %v511, %v519
    %v546 = vmul.f32 %v511, %v520
    %v547 = vmul.f32 %v511, %v521
    %v548 = vmul.f32 %v511, %v522
    %v549 = vmul.f32 %v511, %v523
    %v550 = vmul.f32 %v511, %v524
    %v551 = vmul.f32 %v511, %v525
    %v552 = vmul.f32 %v511, %v526
    %v553 = vmul.f32 %v511, %v527
    %v554 = vmul.f32 %v511, %v528
    %v555 = vmul.f32 %v511, %v529
    %v556 = vmul.f32 %v511, %v530
    %v557 = vmul.f32 %v511, %v531
    %v558 = vmul.f32 %v512, %v519
    %v559 = vmul.f32 %v512, %v520
    %v560 = vmul.f32 %v512, %v521
    %v561 = vmul.f32 %v512, %v522
    %v562 = vmul.f32 %v512, %v523
    %v563 = vmul.f32 %v512, %v524
    %v564 = vmul.f32 %v512, %v525
    %v565 = vmul.f32 %v512, %v526
    %v566 = vmul.f32 %v512, %v527
    %v567 = vmul.f32 %v512, %v528
    %v568 = vmul.f32 %v512, %v529
    %v569 = vmul.f32 %v512, %v530
    %v570 = vmul.f32 %v512, %v531
    %v571 = vadd.f32 %v407, %v545
    %v572 = vadd.f32 %v408, %v546
    %v573 = vadd.f32 %v409, %v547
    %v574 = vadd.f32 %v410, %v548
    %v575 = vadd.f32 %v411, %v549
    %v576 = vadd.f32 %v412, %v550
    %v577 = vadd.f32 %v413, %v551
    %v578 = vadd.f32 %v414, %v552
    %v579 = vadd.f32 %v415, %v553
    %v580 = vadd.f32 %v416, %v554
    %v581 = vadd.f32 %v417, %v555
    %v582 = vadd.f32 %v418, %v556
    %v583 = vadd.f32 %v419, %v557
    %v584 = vadd.f32 %v420, %v558
    %v585 = vadd.f32 %v421, %v559
    %v586 = vadd.f32 %v422, %v560
    %v587 = vadd.f32 %v423, %v561
    %v588 = vadd.f32 %v424, %v562
    %v589 = vadd.f32 %v425, %v563
    %v590 = vadd.f32 %v426, %v564
    %v591 = vadd.f32 %v427, %v565
    %v592 = vadd.f32 %v428, %v566
    %v593 = vadd.f32 %v429, %v567
    %v594 = vadd.f32 %v430, %v568
    %v595 = vadd.f32 %v431, %v569
    %v596 = vadd.f32 %v432, %v570
    %v597 = vld [vmem:[#allocation11] sm:$0xff]
    %v598 = vld [vmem:[#allocation11 + $0x8] sm:$0x1f]
    %v601 = vperm.slane %v597, 0
    %v602 = vperm.slane %v597, 1
    %v603 = vperm.slane %v597, 2
    %v604 = vperm.slane %v597, 3
    %v605 = vperm.slane %v597, 4
    %v606 = vperm.slane %v597, 5
    %v607 = vperm.slane %v597, 6
    %v608 = vperm.slane %v597, 7
    %v609 = vperm.slane %v598, 0
    %v610 = vperm.slane %v598, 1
    %v611 = vperm.slane %v598, 2
    %v612 = vperm.slane %v598, 3
    %v613 = vperm.slane %v598, 4
    %v627 = vadd.f32 %v571, %v601
    %v628 = vadd.f32 %v572, %v602
    %v629 = vadd.f32 %v573, %v603
    %v630 = vadd.f32 %v574, %v604
    %v631 = vadd.f32 %v575, %v605
    %v632 = vadd.f32 %v576, %v606
    %v633 = vadd.f32 %v577, %v607
    %v634 = vadd.f32 %v578, %v608
    %v635 = vadd.f32 %v579, %v609
    %v636 = vadd.f32 %v580, %v610
    %v637 = vadd.f32 %v581, %v611
    %v638 = vadd.f32 %v582, %v612
    %v639 = vadd.f32 %v583, %v613
    %v640 = vadd.f32 %v584, %v601
    %v641 = vadd.f32 %v585, %v602
    %v642 = vadd.f32 %v586, %v603
    %v643 = vadd.f32 %v587, %v604
    %v644 = vadd.f32 %v588, %v605
    %v645 = vadd.f32 %v589, %v606
    %v646 = vadd.f32 %v590, %v607
    %v647 = vadd.f32 %v591, %v608
    %v648 = vadd.f32 %v592, %v609
    %v649 = vadd.f32 %v593, %v610
    %v650 = vadd.f32 %v594, %v611
    %v651 = vadd.f32 %v595, %v612
    %v652 = vadd.f32 %v596, %v613
    %v653 = vmax.f32 %v627, 0.0
    %v654 = vmax.f32 %v628, 0.0
    %v655 = vmax.f32 %v629, 0.0
    %v656 = vmax.f32 %v630, 0.0
    %v657 = vmax.f32 %v631, 0.0
    %v658 = vmax.f32 %v632, 0.0
    %v659 = vmax.f32 %v633, 0.0
    %v660 = vmax.f32 %v634, 0.0
    %v661 = vmax.f32 %v635, 0.0
    %v662 = vmax.f32 %v636, 0.0
    %v663 = vmax.f32 %v637, 0.0
    %v664 = vmax.f32 %v638, 0.0
    %v665 = vmax.f32 %v639, 0.0
    %v666 = vmax.f32 %v640, 0.0
    %v667 = vmax.f32 %v641, 0.0
    %v668 = vmax.f32 %v642, 0.0
    %v669 = vmax.f32 %v643, 0.0
    %v670 = vmax.f32 %v644, 0.0
    %v671 = vmax.f32 %v645, 0.0
    %v672 = vmax.f32 %v646, 0.0
    %v673 = vmax.f32 %v647, 0.0
    %v674 = vmax.f32 %v648, 0.0
    %v675 = vmax.f32 %v649, 0.0
    %v676 = vmax.f32 %v650, 0.0
    %v677 = vmax.f32 %v651, 0.0
    %v678 = vmax.f32 %v652, 0.0
    %679 = vst [vmem:[#allocation12] sm:$0xff] %v653
    %680 = vst [vmem:[#allocation12 + $0x8] sm:$0xff] %v654
    %681 = vst [vmem:[#allocation12 + $0x10] sm:$0xff] %v655
    %682 = vst [vmem:[#allocation12 + $0x18] sm:$0xff] %v656
    %683 = vst [vmem:[#allocation12 + $0x20] sm:$0xff] %v657
    %684 = vst [vmem:[#allocation12 + $0x28] sm:$0xff] %v658
    %685 = vst [vmem:[#allocation12 + $0x30] sm:$0xff] %v659
    %686 = vst [vmem:[#allocation12 + $0x38] sm:$0xff] %v660
    %687 = vst [vmem:[#allocation12 + $0x40] sm:$0xff] %v661
    %688 = vst [vmem:[#allocation12 + $0x48] sm:$0xff] %v662
    %689 = vst [vmem:[#allocation12 + $0x50] sm:$0xff] %v663
    %690 = vst [vmem:[#allocation12 + $0x58] sm:$0xff] %v664
    %691 = vst [vmem:[#allocation12 + $0x60] sm:$0xff] %v665
    %692 = vst [vmem:[#allocation12 + $0x68] sm:$0x3] %v666
    %693 = vst [vmem:[#allocation12 + $0x70] sm:$0x3] %v667
    %694 = vst [vmem:[#allocation12 + $0x78] sm:$0x3] %v668
    %695 = vst [vmem:[#allocation12 + $0x80] sm:$0x3] %v669
    %696 = vst [vmem:[#allocation12 + $0x88] sm:$0x3] %v670
    %697 = vst [vmem:[#allocation12 + $0x90] sm:$0x3] %v671
    %698 = vst [vmem:[#allocation12 + $0x98] sm:$0x3] %v672
    %699 = vst [vmem:[#allocation12 + $0xa0] sm:$0x3] %v673
    %700 = vst [vmem:[#allocation12 + $0xa8] sm:$0x3] %v674
    %701 = vst [vmem:[#allocation12 + $0xb0] sm:$0x3] %v675
    %702 = vst [vmem:[#allocation12 + $0xb8] sm:$0x3] %v676
    %703 = vst [vmem:[#allocation12 + $0xc0] sm:$0x3] %v677
    %704 = vst [vmem:[#allocation12 + $0xc8] sm:$0x3] %v678
    // Predicated region
    $region42: #{tpu_custom_call.1} parent=1 // pred_check
      _
    $region43: #{tpu_custom_call.1} parent=1 // pred_check_branch
      %706 = sbr.rel (0) target = $region45
    $region44: #{tpu_custom_call.1} parent=1 // pred_region
      %708 = vsyncadd [#allocation4], 0
      %s709 = sshll.u32 [#allocation12], 4
      %s710 = int_to_ptr.vmem [resolvable:$true] %s709
      %s711 = sshll.u32 %s5, 4
      %s712 = int_to_ptr.hbm [resolvable:$true] %s711
      %717 = dma.vmem_to_hbm [thread:$0]  %s710, 3328, %s712, [#allocation4], 1664, 1664, 104
    $region45: #{tpu_custom_call.1} parent=1 // pred_fallthru
      _
    // Predicated region
    $region46: #{tpu_custom_call.1} parent=1 // pred_check
      _
    $region47: #{tpu_custom_call.1} parent=1 // pred_check_branch
      %719 = sbr.rel (0) target = $region49
    $region48: #{tpu_custom_call.1} parent=1 // pred_region
      %721 = dma.done [#allocation4], 3328
    $region49: #{tpu_custom_call.1} parent=1 // pred_fallthru
      _
    %722 = vsyncpa [#allocation3], 1
    %723 = vsyncpa [#allocation10], 1
    %724 = vsyncpa [#allocation4], 1
    %725 = vsyncpa [#allocation5], 1
    %726 = vsyncpa [#allocation6], 1

</llo_original>
